<compile_context>
chip_gen: v7x
topology: tpu7x:2x2x1
jax: 0.10.0
libtpu: 0.0.40
codegen_flags: <defaults>
</compile_context>

<pallas_src>
import functools

import jax
import jax.numpy as jnp
from jax.experimental import pallas as pl
from jax.experimental.pallas import tpu as pltpu


def _round_up(x, m):
    return (x + m - 1) // m * m


# Working-set target for the auto tile chooser; fits every generation's scoped-VMEM default
# (v5e 16 MiB, v6e/v7x 32 MiB) with double buffering.
_VMEM_BUDGET_BYTES = 12 * 1024 * 1024
_MAX_TILE_N = 2048


def _choose_tile(N, F, tile_n):
    n8 = _round_up(max(int(N), 1), 8)
    if tile_n is None:
        # Double-buffered bytes per tile row: x block (2*F f32, x2) + out block (F f32, x2)
        # = 24 * F bytes / row.  Weights are small next to this for realistic F.
        tile_n = _VMEM_BUDGET_BYTES // (24 * int(F))
        tile_n = min(tile_n, _MAX_TILE_N)   # keep several grid steps for megacore sharding
    tile_n = max(8, min(int(tile_n), n8))
    return _round_up(tile_n, 8)


def _bitwise_logis_kernel(x_ref, trans_ref, bias_ref, lw_ref, lb_ref, out_ref,
                          *, layer_predict):
    # x_ref: (2, tn, F) node-feature tile for both metapaths.
    _, tn, f = x_ref.shape

    # Fused MXU matmul for both metapaths: (2*tn, F) @ (F, F).
    x2 = x_ref[...].reshape(2 * tn, f)
    h = jnp.tanh(
        jnp.dot(x2, trans_ref[...], preferred_element_type=jnp.float32)
        + bias_ref[...])                                   # (2*tn, F)
    h0 = h[:tn]
    h1 = h[tn:]
    if layer_predict == 0:
        hp, hnp = h0, h1          # predicted layer / the other layer
    else:
        hp, hnp = h1, h0

    # LogisticVector as VPU multiply + lane (XLU) reduce instead of a (F,1) MXU matmul.
    #   w_k = sigmoid( sum_f h_k * h_p * lw + lb )
    lw = lw_ref[...]                                       # (1, F)
    lb = lb_ref[0]                                         # scalar (SMEM)
    t = hp * lw                                            # shared h_p * lw
    w_p = jax.nn.sigmoid(jnp.sum(hp * t, axis=-1, keepdims=True) + lb)   # (tn, 1)
    w_np = jax.nn.sigmoid(jnp.sum(hnp * t, axis=-1, keepdims=True) + lb)  # (tn, 1)

    # 2-way softmax over metapaths; only the non-predicted weight is used:
    #   softmax2(w_np, w_p)[np] = sigmoid(w_np - w_p)
    a_np = jax.nn.sigmoid(w_np - w_p)                      # (tn, 1)

    out_ref[...] = hp + a_np * hnp


def bitwise_multiply_logis(node_features, trans, bias, logis_w, logis_b,
                           layer_predict, *, tile_n=None):
    """node_features: [M=2, N, F].  Returns X: [N, F] float32."""
    M, N, F = node_features.shape
    assert M == 2, "reference module hard-codes metapath_number = 2"

    tile = _choose_tile(N, F, tile_n)
    grid = (pl.cdiv(N, tile),)                 # ragged N: last block is masked by Pallas

    x = node_features.astype(jnp.float32)
    trans_f = jnp.asarray(trans, jnp.float32).reshape(F, F)
    bias2 = jnp.asarray(bias, jnp.float32).reshape(1, F)
    lw2 = jnp.asarray(logis_w, jnp.float32).reshape(1, F)   # (F,1) -> (1,F), same order
    lb1 = jnp.asarray(logis_b, jnp.float32).reshape(1)

    kernel = functools.partial(_bitwise_logis_kernel,
                               layer_predict=int(layer_predict))

    # Rough per-step VMEM need (double-buffered x/out blocks + weights).
    est_vmem = 2 * (2 * tile * F + tile * F) * 4 + 2 * (F * F + 3 * F) * 4
    cp_kwargs = dict(dimension_semantics=("parallel",))
    if est_vmem > 16 * 1024 * 1024:
        # Raise the scoped-VMEM limit (v5e defaults to 16 MiB); stay under v7x's 64 MiB.
        cp_kwargs["vmem_limit_bytes"] = int(min(est_vmem * 3 // 2, 60 * 1024 * 1024))
    # NOTE: for very large F, single-buffering the constant-index weight inputs
    # (pipeline_mode=pl.Buffered(1)) would free F*F*4 bytes more VMEM headroom.

    return pl.pallas_call(
        kernel,
        out_shape=jax.ShapeDtypeStruct((N, F), jnp.float32),
        grid=grid,
        in_specs=[
            pl.BlockSpec((2, tile, F), lambda i: (0, i, 0)),          # node features
            pl.BlockSpec((F, F), lambda i: (0, 0)),                   # trans
            pl.BlockSpec((1, F), lambda i: (0, 0)),                   # bias
            pl.BlockSpec((1, F), lambda i: (0, 0)),                   # logis weight
            pl.BlockSpec(memory_space=pltpu.MemorySpace.SMEM),        # logis bias (scalar)
        ],
        out_specs=pl.BlockSpec((tile, F), lambda i: (i, 0)),
        compiler_params=pltpu.CompilerParams(**cp_kwargs),
    )(x, trans_f, bias2, lw2, lb1)


def _reference(node_features, trans, bias, logis_w, logis_b, layer_predict):
    """Pure-JAX transcription of the torch forward."""
    h = jnp.tanh(jnp.einsum("mnf,fg->mng", node_features, trans) + bias)
    hp = h[layer_predict]
    s = h * hp[None]
    logits = jax.nn.sigmoid(
        jnp.einsum("mnf,fo->mno", s, logis_w)[..., 0] + logis_b)   # [M, N]
    w = jax.nn.softmax(logits, axis=0)
    Z = jnp.zeros_like(hp)
    for kk in range(node_features.shape[0]):
        if kk == layer_predict:
            continue
        Z = Z + w[kk][:, None] * h[kk]
    return hp + Z


if __name__ == "__main__":
    key = jax.random.PRNGKey(0)
    k_x, k_w, k_b, k_x2 = jax.random.split(key, 4)

    M, N, F = 2, 16, 32
    lim = 1.0 / float(F) ** 0.5
    logis_w = jax.random.uniform(k_w, (F, 1), jnp.float32, -lim, lim)
    logis_b = jax.random.uniform(k_b, (), jnp.float32, -lim, lim)

    # Config A: module defaults (trans = I, bias = 0), layer_predict = 0, auto tile.
    node_features = jax.random.normal(k_x, (M, N, F), dtype=jnp.float32)
    trans = jnp.eye(F, dtype=jnp.float32)
    bias = jnp.zeros((F,), dtype=jnp.float32)
    out = jax.block_until_ready(
        bitwise_multiply_logis(node_features, trans, bias, logis_w, logis_b, 0))
    ref = _reference(node_features, trans, bias, logis_w, logis_b, 0)
    assert out.shape == (N, F)
    assert jnp.allclose(out, ref, atol=1e-4, rtol=1e-4), float(jnp.max(jnp.abs(out - ref)))

    # Config B: ragged N (not a multiple of the tile), non-trivial weights, layer_predict=1,
    # multi-step grid with a masked boundary block.
    N2 = 20
    nf2 = jax.random.normal(k_x2, (M, N2, F), dtype=jnp.float32)
    trans2 = trans + 0.05 * jax.random.normal(k_w, (F, F), dtype=jnp.float32)
    bias2 = 0.1 * jax.random.normal(k_b, (F,), dtype=jnp.float32)
    out2 = jax.block_until_ready(
        bitwise_multiply_logis(nf2, trans2, bias2, logis_w, logis_b, 1, tile_n=8))
    ref2 = _reference(nf2, trans2, bias2, logis_w, logis_b, 1)
    assert out2.shape == (N2, F)
    assert jnp.allclose(out2, ref2, atol=1e-4, rtol=1e-4), float(jnp.max(jnp.abs(out2 - ref2)))

    print("KERNEL_OK")
</pallas_src>

<mosaic_0001>
module attributes {stable_mosaic.version = 11 : i64} {
  func.func @_bitwise_logis_kernel(%arg0: i32, %arg1: memref<2x16x32xf32, #tpu.memory_space<vmem>>, %arg2: memref<32x32xf32, #tpu.memory_space<vmem>>, %arg3: memref<1x32xf32, #tpu.memory_space<vmem>>, %arg4: memref<1x32xf32, #tpu.memory_space<vmem>>, %arg5: memref<1xf32, #tpu.memory_space<smem>>, %arg6: memref<16x32xf32, #tpu.memory_space<vmem>>) attributes {dimension_semantics = [#tpu.dimension_semantics<parallel>], iteration_bounds = array<i64: 1>, scalar_prefetch = 0 : i64, scratch_operands = 0 : i64, tpu.core_type = #tpu.core_type<tc>, window_params = [{transform_indices = @transform_0, window_bounds = array<i64: 2, 16, 32>}, {pipeline_mode = #tpu.pipeline_mode<synchronous>, transform_indices = @transform_1, window_bounds = array<i64: 32, 32>}, {pipeline_mode = #tpu.pipeline_mode<synchronous>, transform_indices = @transform_2, window_bounds = array<i64: 1, 32>}, {pipeline_mode = #tpu.pipeline_mode<synchronous>, transform_indices = @transform_3, window_bounds = array<i64: 1, 32>}, {transform_indices = @transform_4, window_bounds = array<i64: 1>}, {transform_indices = @transform_5, window_bounds = array<i64: 16, 32>}]} {
    %c0 = arith.constant 0 : index
    %c0_0 = arith.constant 0 : index
    %c0_1 = arith.constant 0 : index
    %0 = vector.load %arg1[%c0, %c0_0, %c0_1] : memref<2x16x32xf32, #tpu.memory_space<vmem>>, vector<2x16x32xf32>
    %1 = vector.shape_cast %0 : vector<2x16x32xf32> to vector<32x32xf32>
    %c0_2 = arith.constant 0 : index
    %c0_3 = arith.constant 0 : index
    %2 = vector.load %arg2[%c0_2, %c0_3] : memref<32x32xf32, #tpu.memory_space<vmem>>, vector<32x32xf32>
    %cst = arith.constant dense<0.000000e+00> : vector<32x32xf32>
    %3 = tpu.matmul %1, %2, %cst {dimension_numbers = #tpu.dot_dimension_numbers<[1], [0], [0], [1], [0, 0, 1, 1], [], []>} : vector<32x32xf32>, vector<32x32xf32>, vector<32x32xf32> -> vector<32x32xf32>
    %c0_4 = arith.constant 0 : index
    %c0_5 = arith.constant 0 : index
    %4 = vector.load %arg3[%c0_4, %c0_5] : memref<1x32xf32, #tpu.memory_space<vmem>>, vector<1x32xf32>
    %5 = vector.broadcast %4 : vector<1x32xf32> to vector<32x32xf32>
    %6 = arith.addf %3, %5 : vector<32x32xf32>
    %7 = math.tanh %6 : vector<32x32xf32>
    %8 = vector.extract_strided_slice %7 {offsets = [0, 0], sizes = [16, 32], strides = [1, 1]} : vector<32x32xf32> to vector<16x32xf32>
    %9 = vector.extract_strided_slice %7 {offsets = [16, 0], sizes = [16, 32], strides = [1, 1]} : vector<32x32xf32> to vector<16x32xf32>
    %c0_6 = arith.constant 0 : index
    %c0_7 = arith.constant 0 : index
    %10 = vector.load %arg4[%c0_6, %c0_7] : memref<1x32xf32, #tpu.memory_space<vmem>>, vector<1x32xf32>
    %c0_8 = arith.constant 0 : index
    %11 = memref.load %arg5[%c0_8] : memref<1xf32, #tpu.memory_space<smem>>
    %12 = vector.broadcast %10 : vector<1x32xf32> to vector<16x32xf32>
    %13 = arith.mulf %8, %12 : vector<16x32xf32>
    %14 = arith.mulf %8, %13 : vector<16x32xf32>
    %cst_9 = arith.constant dense<0.000000e+00> : vector<16xf32>
    %15 = vector.multi_reduction <add>, %14, %cst_9 [1] : vector<16x32xf32> to vector<16xf32>
    %16 = vector.shape_cast %15 : vector<16xf32> to vector<16x1xf32>
    %17 = vector.broadcast %11 : f32 to vector<16x1xf32>
    %18 = arith.addf %16, %17 : vector<16x1xf32>
    %19 = arith.negf %18 : vector<16x1xf32>
    %20 = math.exp %19 : vector<16x1xf32>
    %cst_10 = arith.constant 1.000000e+00 : f32
    %21 = vector.broadcast %cst_10 : f32 to vector<16x1xf32>
    %22 = arith.addf %21, %20 : vector<16x1xf32>
    %23 = arith.divf %21, %22 : vector<16x1xf32>
    %24 = arith.mulf %9, %13 : vector<16x32xf32>
    %cst_11 = arith.constant dense<0.000000e+00> : vector<16xf32>
    %25 = vector.multi_reduction <add>, %24, %cst_11 [1] : vector<16x32xf32> to vector<16xf32>
    %26 = vector.shape_cast %25 : vector<16xf32> to vector<16x1xf32>
    %27 = vector.broadcast %11 : f32 to vector<16x1xf32>
    %28 = arith.addf %26, %27 : vector<16x1xf32>
    %29 = arith.negf %28 : vector<16x1xf32>
    %30 = math.exp %29 : vector<16x1xf32>
    %cst_12 = arith.constant 1.000000e+00 : f32
    %31 = vector.broadcast %cst_12 : f32 to vector<16x1xf32>
    %32 = arith.addf %31, %30 : vector<16x1xf32>
    %33 = arith.divf %31, %32 : vector<16x1xf32>
    %34 = arith.subf %33, %23 : vector<16x1xf32>
    %35 = arith.negf %34 : vector<16x1xf32>
    %36 = math.exp %35 : vector<16x1xf32>
    %cst_13 = arith.constant 1.000000e+00 : f32
    %37 = vector.broadcast %cst_13 : f32 to vector<16x1xf32>
    %38 = arith.addf %37, %36 : vector<16x1xf32>
    %39 = arith.divf %37, %38 : vector<16x1xf32>
    %40 = vector.broadcast %39 : vector<16x1xf32> to vector<16x32xf32>
    %41 = arith.mulf %40, %9 : vector<16x32xf32>
    %42 = arith.addf %8, %41 : vector<16x32xf32>
    %c0_14 = arith.constant 0 : index
    %c0_15 = arith.constant 0 : index
    %43 = vector.load %arg6[%c0_14, %c0_15] : memref<16x32xf32, #tpu.memory_space<vmem>>, vector<16x32xf32>
    tpu.vector_store %arg6[%c0_14, %c0_15], %42 {strides = array<i32>} : memref<16x32xf32, #tpu.memory_space<vmem>>, vector<16x32xf32>,
    return
  }
  func.func @transform_0(%arg0: i32) -> (i32, i32, i32) {
    %c0_i32 = arith.constant 0 : i32
    %c0_i32_0 = arith.constant 0 : i32
    %c0_i32_1 = arith.constant 0 : i32
    return %c0_i32, %arg0, %c0_i32_0 : i32, i32, i32
  }
  func.func @transform_1(%arg0: i32) -> (i32, i32) {
    %c0_i32 = arith.constant 0 : i32
    %c0_i32_0 = arith.constant 0 : i32
    %c0_i32_1 = arith.constant 0 : i32
    return %c0_i32, %c0_i32_0 : i32, i32
  }
  func.func @transform_2(%arg0: i32) -> (i32, i32) {
    %c0_i32 = arith.constant 0 : i32
    %c0_i32_0 = arith.constant 0 : i32
    %c0_i32_1 = arith.constant 0 : i32
    return %c0_i32, %c0_i32_0 : i32, i32
  }
  func.func @transform_3(%arg0: i32) -> (i32, i32) {
    %c0_i32 = arith.constant 0 : i32
    %c0_i32_0 = arith.constant 0 : i32
    %c0_i32_1 = arith.constant 0 : i32
    return %c0_i32, %c0_i32_0 : i32, i32
  }
  func.func @transform_4(%arg0: i32) -> i32 {
    %c0_i32 = arith.constant 0 : i32
    %c0_i32_0 = arith.constant 0 : i32
    return %c0_i32 : i32
  }
  func.func @transform_5(%arg0: i32) -> (i32, i32) {
    %c0_i32 = arith.constant 0 : i32
    %c0_i32_0 = arith.constant 0 : i32
    return %arg0, %c0_i32 : i32, i32
  }
}

</mosaic_0001>

<llo_original>
// kernel: tpu_custom_call.1
$region0: #{tpu_custom_call.1}
  #allocation0 [shape = 'u32[]', space=smem, size = 0x4, offset = 0x4, fixed_abs, tag = 'smem constant byte address 0x4 - core index']
  #allocation1 [shape = 'u32[144,128]{1,0:T(1,128)}', space=vmem, size = 0x12000, scoped, tag = 'internal scratch']
  #allocation2 [shape = 'f32[1]{0:T(128)S(6)}', space=smem, size = 0x200, scoped, tag = 'scoped memory for tpu_custom_call.1']
  %s0 = inlined_call_operand.hbm [shape: f32[2,16,32], index: 0, kind: input, shape index: {}]
  %s1 = inlined_call_operand.hbm [shape: f32[32,32], index: 1, kind: input, shape index: {}]
  %s2 = inlined_call_operand.vmem [shape: f32[1,32], index: 2, kind: input, shape index: {}]
  %s3 = inlined_call_operand.vmem [shape: f32[1,32], index: 3, kind: input, shape index: {}]
  %s4 = inlined_call_operand.<no memory space> [shape: f32[1], index: 4, kind: input, shape index: {}]
  %s5 = inlined_call_operand.hbm [shape: f32[16,32], index: 5, kind: output, shape index: {}]
  %s6 = sld [smem:[#allocation0]]
  $region38: #{tpu_custom_call.1} parent=0
    _
  %s8 = ssub.s32 1, %s6
  %s9 = scalar_select 0, %s8, %s6
  %10 = sst [smem:[#allocation2]] %s4
  $region1: #{tpu_custom_call.1} parent=0
    #allocation3 [shape = 'u8[16384]{0}', space=vmem, size = 0x4000, scoped, tag = 'input window, operand 0, single buffered']
    #allocation4 [shape = 's32[1]{0}', space=sflag, size = 0x4, scoped, tag = 'scoped memory for tpu_custom_call.1']
    #allocation5 [shape = 's32[1]{0}', space=sflag, size = 0x4, scoped, tag = 'scoped memory for tpu_custom_call.1']
    #allocation6 [shape = 'u8[16384]{0}', space=vmem, size = 0x4000, scoped, tag = 'input window, operand 1, single buffered']
    #allocation7 [shape = 's32[1]{0}', space=sflag, size = 0x4, scoped, tag = 'scoped memory for tpu_custom_call.1']
    #allocation8 [shape = 'u8[8192]{0}', space=vmem, size = 0x2000, scoped, tag = 'output window, operand 0, single buffered']
    %11 = vsyncpa [#allocation4], 0
    %12 = vsyncpa [#allocation7], 0
    %13 = vsyncpa [#allocation5], 0
    // Predicated region
    $region2: #{tpu_custom_call.1} parent=1 // pred_check
      _
    $region3: #{tpu_custom_call.1} parent=1 // pred_check_branch
      %15 = sbr.rel (0) target = $region5
    $region4: #{tpu_custom_call.1} parent=1 // pred_region
      %s17 = ssub.s32 512, 512
      %18 = vsyncadd [#allocation4], %s17
      %s19 = sshll.u32 [#allocation3], 4
      %s20 = int_to_ptr.vmem [resolvable:$true] %s19
      %25 = dma.hbm_to_vmem [thread:$0]  %s0, 512, %s20, [#allocation4], 128, 128, 8
    $region5: #{tpu_custom_call.1} parent=1 // pred_fallthru
      _
    // Predicated region
    $region6: #{tpu_custom_call.1} parent=1 // pred_check
      _
    $region7: #{tpu_custom_call.1} parent=1 // pred_check_branch
      %27 = sbr.rel (0) target = $region9
    $region8: #{tpu_custom_call.1} parent=1 // pred_region
      %s29 = ssub.s32 512, 512
      %30 = vsyncadd [#allocation7], %s29
      %s31 = sshll.u32 [#allocation6], 4
      %s32 = int_to_ptr.vmem [resolvable:$true] %s31
      %37 = dma.hbm_to_vmem [thread:$0]  %s1, 512, %s32, [#allocation7], 128, 128, 8
    $region9: #{tpu_custom_call.1} parent=1 // pred_fallthru
      _
    // Predicated region
    $region10: #{tpu_custom_call.1} parent=1 // pred_check
      _
    $region11: #{tpu_custom_call.1} parent=1 // pred_check_branch
      %39 = sbr.rel (0) target = $region13
    $region12: #{tpu_custom_call.1} parent=1 // pred_region
      _
    $region13: #{tpu_custom_call.1} parent=1 // pred_fallthru
      _
    // Predicated region
    $region14: #{tpu_custom_call.1} parent=1 // pred_check
      _
    $region15: #{tpu_custom_call.1} parent=1 // pred_check_branch
      %41 = sbr.rel (0) target = $region17
    $region16: #{tpu_custom_call.1} parent=1 // pred_region
      _
    $region17: #{tpu_custom_call.1} parent=1 // pred_fallthru
      _
    // Predicated region
    $region18: #{tpu_custom_call.1} parent=1 // pred_check
      _
    $region19: #{tpu_custom_call.1} parent=1 // pred_check_branch
      %43 = sbr.rel (0) target = $region21
    $region20: #{tpu_custom_call.1} parent=1 // pred_region
      _
    $region21: #{tpu_custom_call.1} parent=1 // pred_fallthru
      _
    // Predicated region
    $region22: #{tpu_custom_call.1} parent=1 // pred_check
      _
    $region23: #{tpu_custom_call.1} parent=1 // pred_check_branch
      %45 = sbr.rel (0) target = $region25
    $region24: #{tpu_custom_call.1} parent=1 // pred_region
      %46 = dma.done [#allocation4], 512
    $region25: #{tpu_custom_call.1} parent=1 // pred_fallthru
      _
    // Predicated region
    $region26: #{tpu_custom_call.1} parent=1 // pred_check
      _
    $region27: #{tpu_custom_call.1} parent=1 // pred_check_branch
      %48 = sbr.rel (0) target = $region29
    $region28: #{tpu_custom_call.1} parent=1 // pred_region
      %49 = dma.done [#allocation7], 512
    $region29: #{tpu_custom_call.1} parent=1 // pred_fallthru
      _
    %v50 = vld [vmem:[#allocation3] sm:$0xff]
    %v51 = vld [vmem:[#allocation3 + $0x8] sm:$0xff]
    %v52 = vld [vmem:[#allocation3 + $0x10] sm:$0xff]
    %v53 = vld [vmem:[#allocation3 + $0x18] sm:$0xff]
    %v54 = vld [vmem:[#allocation6] sm:$0xff]
    %v55 = vld [vmem:[#allocation6 + $0x8] sm:$0xff]
    %v56 = vld [vmem:[#allocation6 + $0x10] sm:$0xff]
    %v57 = vld [vmem:[#allocation6 + $0x18] sm:$0xff]
    %v58 = vld [vmem:[%s2] sm:$0x1]
    %v60 = vlaneseq
    %v61 = vshrl.u32 %v60, 7
    %v62 = vsub.s32 0, %v61
    %v63 = vrot.slane %v58, %v62
    %vm65 = vcmask 261120
    %v67 = vsel %vm65, %v50, 0
    %v70 = vsel %vm65, %v51, 0
    %v73 = vsel %vm65, %v52, 0
    %v76 = vsel %vm65, %v53, 0
    %78 = vmatprep.subr.mxu0 0.0
    %79 = vmatpush1.msra.mxu0 %v54
    %80 = vmatprep.subr.mxu0 0.0
    %81 = vmatpush1.msra.mxu0 %v55
    %82 = vmatprep.subr.mxu0 0.0
    %83 = vmatpush1.msra.mxu0 %v56
    %84 = vmatprep.subr.mxu0 0.0
    %85 = vmatpush1.msra.mxu0 %v57
    %86 = vmatprep.subr.mxu0 0.0
    %87 = vmatpush1.msra.mxu0 0.0
    %88 = vmatprep.subr.mxu0 0.0
    %89 = vmatpush1.msra.mxu0 0.0
    %90 = vmatprep.subr.mxu0 0.0
    %91 = vmatpush1.msra.mxu0 0.0
    %92 = vmatprep.subr.mxu0 0.0
    %93 = vmatpush1.msra.mxu0 0.0
    %94 = vmatprep.subr.mxu0 0.0
    %95 = vmatpush1.msra.mxu0 0.0
    %96 = vmatprep.subr.mxu0 0.0
    %97 = vmatpush1.msra.mxu0 0.0
    %98 = vmatprep.subr.mxu0 0.0
    %99 = vmatpush1.msra.mxu0 0.0
    %100 = vmatprep.subr.mxu0 0.0
    %101 = vmatpush1.msra.mxu0 0.0
    %102 = vmatprep.subr.mxu0 0.0
    %103 = vmatpush1.msra.mxu0 0.0
    %104 = vmatprep.subr.mxu0 0.0
    %105 = vmatpush1.msra.mxu0 0.0
    %106 = vmatprep.subr.mxu0 0.0
    %107 = vmatpush1.msra.mxu0 0.0
    %108 = vmatprep.subr.mxu0 0.0
    %109 = vmatpush1.msra.mxu0 0.0
    %110 = vmatprep.subr.mxu0 0.0
    %111 = vmatpush1.msra.mxu0 0.0
    %112 = vmatprep.subr.mxu0 0.0
    %113 = vmatpush1.msra.mxu0 0.0
    %114 = vmatprep.subr.mxu0 0.0
    %115 = vmatpush1.msra.mxu0 0.0
    %116 = vmatprep.subr.mxu0 0.0
    %117 = vmatpush1.msra.mxu0 0.0
    %118 = vmatprep.subr.mxu0 0.0
    %119 = vmatpush1.msra.mxu0 0.0
    %120 = vmatprep.subr.mxu0 0.0
    %121 = vmatpush1.msra.mxu0 0.0
    %122 = vmatprep.subr.mxu0 0.0
    %123 = vmatpush1.msra.mxu0 0.0
    %124 = vmatprep.subr.mxu0 0.0
    %125 = vmatpush1.msra.mxu0 0.0
    %126 = vmatprep.subr.mxu0 0.0
    %127 = vmatpush1.msra.mxu0 0.0
    %128 = vmatprep.subr.mxu0 0.0
    %129 = vmatpush1.msra.mxu0 0.0
    %130 = vmatprep.subr.mxu0 0.0
    %131 = vmatpush1.msra.mxu0 0.0
    %132 = vmatprep.subr.mxu0 0.0
    %133 = vmatpush1.msra.mxu0 0.0
    %134 = vmatprep.subr.mxu0 0.0
    %135 = vmatpush1.msra.mxu0 0.0
    %136 = vmatprep.subr.mxu0 0.0
    %137 = vmatpush1.msra.mxu0 0.0
    %138 = vmatprep.subr.mxu0 0.0
    %139 = vmatpush1.msra.mxu0 0.0
    %140 = vmatprep.subr.mxu0 0.0
    %141 = vmatpush1.msra.mxu0 0.0
    %142 = vmatprep.mubr.f32.mxu0 0.0
    %143 = vmatmul.mubr.f32.gmra.mrb[0].mxu0 %v67
    %v144 = vpop.f32.mrb[0].mxu0
    %v145 = vadd.f32 %v63, %v144
    %v146 = vpop.f32.mrb[0].mxu0
    %147 = vmatprep.mubr.f32.mxu0 0.0
    %148 = vmatmul.mubr.f32.gmra.mrb[0].mxu0 %v70
    %v149 = vpop.f32.mrb[0].mxu0
    %v150 = vadd.f32 %v63, %v149
    %v151 = vpop.f32.mrb[0].mxu0
    %152 = vmatprep.mubr.f32.mxu0 0.0
    %153 = vmatmul.mubr.f32.gmra.mrb[0].mxu0 %v73
    %v154 = vpop.f32.mrb[0].mxu0
    %v155 = vadd.f32 %v63, %v154
    %v156 = vpop.f32.mrb[0].mxu0
    %157 = vmatprep.mubr.f32.mxu0 0.0
    %158 = vmatmul.mubr.f32.gmra.mrb[0].mxu0 %v76
    %v159 = vpop.f32.mrb[0].mxu0
    %v160 = vadd.f32 %v63, %v159
    %v161 = vpop.f32.mrb[0].mxu0
    %162 = vdwg.mxu0
    %v163 = vtanh.pop %v145
    %v164 = vtanh.pop %v150
    %v165 = vtanh.pop %v155
    %v166 = vtanh.pop %v160
    %v167 = vld [vmem:[%s3] sm:$0x1]
    %s168 = sld [smem:[#allocation2]]
    %v170 = vlaneseq
    %v171 = vshrl.u32 %v170, 7
    %v172 = vsub.s32 0, %v171
    %v173 = vrot.slane %v167, %v172
    %v175 = vmul.f32 %v163, %v173
    %v176 = vmul.f32 %v164, %v173
    %v177 = vmul.f32 %v163, %v175
    %v178 = vmul.f32 %v164, %v176
    %v179 = vsel %vm65, %v177, 0.0
    %180 = vadd.xlane.f32.xlu0 %v179
    %v181 = vpop.xlane.xlu0 %180
    %v182 = vsel %vm65, %v178, 0.0
    %183 = vadd.xlane.f32.xlu0 %v182
    %v184 = vpop.xlane.xlu0 %183
    %v185 = vstv %s168
    %v186 = vadd.f32 %v181, %v185
    %v187 = vadd.f32 %v184, %v185
    %v188 = vxor.u32 %v186, 2147483648
    %v189 = vxor.u32 %v187, 2147483648
    %v190 = vmul.f32 %v188, 1.442695
    %v191 = vpow.pop %v190
    %v192 = vmul.f32 %v189, 1.442695
    %v193 = vpow.pop %v192
    %v194 = vadd.f32 %v191, 1.0
    %v195 = vadd.f32 %v193, 1.0
    %v196 = vrcp.pop %v194
    %v197 = vmul.f32 1.0, %v196
    %v198 = vrcp.pop %v195
    %v199 = vmul.f32 1.0, %v198
    %v200 = vmul.f32 %v165, %v175
    %v201 = vmul.f32 %v166, %v176
    %v202 = vsel %vm65, %v200, 0.0
    %203 = vadd.xlane.f32.xlu0 %v202
    %v204 = vpop.xlane.xlu0 %203
    %v205 = vsel %vm65, %v201, 0.0
    %206 = vadd.xlane.f32.xlu0 %v205
    %v207 = vpop.xlane.xlu0 %206
    %v208 = vadd.f32 %v204, %v185
    %v209 = vadd.f32 %v207, %v185
    %v210 = vxor.u32 %v208, 2147483648
    %v211 = vxor.u32 %v209, 2147483648
    %v212 = vmul.f32 %v210, 1.442695
    %v213 = vpow.pop %v212
    %v214 = vmul.f32 %v211, 1.442695
    %v215 = vpow.pop %v214
    %v216 = vadd.f32 %v213, 1.0
    %v217 = vadd.f32 %v215, 1.0
    %v218 = vrcp.pop %v216
    %v219 = vmul.f32 1.0, %v218
    %v220 = vrcp.pop %v217
    %v221 = vmul.f32 1.0, %v220
    %v222 = vsub.f32 %v219, %v197
    %v223 = vsub.f32 %v221, %v199
    %v224 = vxor.u32 %v222, 2147483648
    %v225 = vxor.u32 %v223, 2147483648
    %v226 = vmul.f32 %v224, 1.442695
    %v227 = vpow.pop %v226
    %v228 = vmul.f32 %v225, 1.442695
    %v229 = vpow.pop %v228
    %v230 = vadd.f32 %v227, 1.0
    %v231 = vadd.f32 %v229, 1.0
    %v232 = vrcp.pop %v230
    %v233 = vmul.f32 1.0, %v232
    %v234 = vrcp.pop %v231
    %v235 = vmul.f32 1.0, %v234
    %v236 = vmul.f32 %v233, %v165
    %v237 = vmul.f32 %v235, %v166
    %v238 = vadd.f32 %v163, %v236
    %v239 = vadd.f32 %v164, %v237
    %240 = vst.msk [vmem:[#allocation8] sm:$0xff] %vm65, %v238
    %241 = vst.msk [vmem:[#allocation8 + $0x8] sm:$0xff] %vm65, %v239
    // Predicated region
    $region30: #{tpu_custom_call.1} parent=1 // pred_check
      _
    $region31: #{tpu_custom_call.1} parent=1 // pred_check_branch
      %243 = sbr.rel (0) target = $region33
    $region32: #{tpu_custom_call.1} parent=1 // pred_region
      %s245 = ssub.s32 256, 256
      %246 = vsyncadd [#allocation5], %s245
      %s247 = sshll.u32 [#allocation8], 4
      %s248 = int_to_ptr.vmem [resolvable:$true] %s247
      %253 = dma.vmem_to_hbm [thread:$0]  %s248, 256, %s5, [#allocation5], 128, 128, 8
    $region33: #{tpu_custom_call.1} parent=1 // pred_fallthru
      _
    // Predicated region
    $region34: #{tpu_custom_call.1} parent=1 // pred_check
      _
    $region35: #{tpu_custom_call.1} parent=1 // pred_check_branch
      %255 = sbr.rel (0) target = $region37
    $region36: #{tpu_custom_call.1} parent=1 // pred_region
      %256 = dma.done [#allocation5], 256
    $region37: #{tpu_custom_call.1} parent=1 // pred_fallthru
      _
    %257 = vsyncpa [#allocation4], 1
    %258 = vsyncpa [#allocation7], 1
    %259 = vsyncpa [#allocation5], 1

</llo_original>
